<compile_context>
chip_gen: v6e
topology: v6e:2x2x1
jax: 0.10.0
libtpu: 0.0.40
codegen_flags: <defaults>
</compile_context>

<pallas_src>
import functools

import jax
import jax.numpy as jnp
from jax.experimental import pallas as pl
from jax.experimental.pallas import tpu as pltpu

_LANE = 128
_NEG_BIG = -1e30  # softmax mask value for padded output lanes


def _round_up(x, m):
    return ((x + m - 1) // m) * m


def dummy_model_kernel(idx_ref, emb_ref, w_ref, b_ref, out_ref, pooled_ref,
                       *, bag, block_b):
    """softmax(mean_gather(emb, idx) @ W_eff + b_eff, axis=-1) for one batch tile.

    idx_ref   : SMEM (B_pad, bag) int32     -- scalar-prefetched bag indices
    emb_ref   : VMEM (V, E_pad)   float32   -- embedding table, zero-padded lanes
    w_ref     : VMEM (E_pad, O_pad) float32 -- folded dense-stack weight
    b_ref     : VMEM (1, O_pad)   float32   -- folded bias; padded lanes = -1e30
    out_ref   : VMEM (block_b, O_pad) float32
    pooled_ref: VMEM scratch (block_b, E_pad) float32
    """
    tb = pl.program_id(0)
    inv_bag = 1.0 / float(bag)

    # EmbeddingBag(mode='mean'): gather `bag` rows per batch row and average.
    @pl.loop(0, block_b)
    def _(r):
        row = tb * block_b + r
        acc = emb_ref[pl.ds(idx_ref[row, 0], 1), :]
        for j in range(1, bag):
            acc = acc + emb_ref[pl.ds(idx_ref[row, j], 1), :]
        pooled_ref[pl.ds(r, 1), :] = acc * inv_bag

    # Folded dense stack: a single lane-dense matmul + bias.
    h = jnp.dot(pooled_ref[...], w_ref[...],
                preferred_element_type=jnp.float32) + b_ref[...]

    # softmax over dim=1; padded lanes carry a -1e30 bias -> exp() == 0.
    m = jnp.max(h, axis=-1, keepdims=True)
    e = jnp.exp(h - m)
    denom = jnp.sum(e, axis=-1, keepdims=True)
    out_ref[...] = (e * pl.reciprocal(denom, approx=True)).astype(out_ref.dtype)


def dummy_model_forward(indices, emb_table, weights, biases):
    """indices: (B, bag) int32; emb_table: (V, E); weights: (L, O, I); biases: (L, O)."""
    B, bag = indices.shape
    V, E = emb_table.shape
    L, O, I = weights.shape
    assert I == E and O == I, "stacked Linear layers require in == out == embedding_dim"

    # ---- parameter-only preprocessing (one-time; independent of batch) ----
    # Fold the activation-free Linear stack:  y = x @ W1^T @ ... @ WL^T + b_eff.
    w_eff = jnp.eye(E, dtype=jnp.float32)
    b_eff = jnp.zeros((O,), dtype=jnp.float32)
    for l in range(L):
        wl_t = weights[l].astype(jnp.float32).T          # (I, O)
        w_eff = w_eff @ wl_t
        b_eff = b_eff @ wl_t + biases[l].astype(jnp.float32)

    # Zero-pad feature dims to a lane-dense multiple of 128.
    e_pad = _round_up(E, _LANE)
    o_pad = _round_up(O, _LANE)
    emb_p = jnp.zeros((V, e_pad), jnp.float32).at[:, :E].set(emb_table.astype(jnp.float32))
    w_p = jnp.zeros((e_pad, o_pad), jnp.float32).at[:E, :O].set(w_eff)
    b_p = jnp.full((1, o_pad), _NEG_BIG, jnp.float32).at[0, :O].set(b_eff)

    # Batch tiling: "parallel" grid axis (shards across v7x's 2 TensorCores
    # once B is non-trivial); padded batch rows use index 0 and are sliced off.
    block_b = min(256, _round_up(B, 8))
    b_padded = _round_up(B, block_b)
    idx_p = jnp.zeros((b_padded, bag), jnp.int32).at[:B, :].set(indices.astype(jnp.int32))
    grid = (b_padded // block_b,)

    kernel = functools.partial(dummy_model_kernel, bag=bag, block_b=block_b)

    out_p = pl.pallas_call(
        kernel,
        out_shape=jax.ShapeDtypeStruct((b_padded, o_pad), jnp.float32),
        grid_spec=pltpu.PrefetchScalarGridSpec(
            num_scalar_prefetch=1,            # bag indices -> SMEM
            grid=grid,
            in_specs=[
                # TODO(synk): for large V keep the table in memory_space=pl.ANY
                # and DMA only the gathered rows (v7x has 64 MiB VMEM). At the
                # spec's V=64, E_pad=128 the whole table is 32 KiB, so VMEM-
                # resident is the right call here.
                pl.BlockSpec((V, e_pad), lambda i, idx: (0, 0)),
                pl.BlockSpec((e_pad, o_pad), lambda i, idx: (0, 0)),
                pl.BlockSpec((1, o_pad), lambda i, idx: (0, 0)),
            ],
            out_specs=pl.BlockSpec((block_b, o_pad), lambda i, idx: (i, 0)),
            scratch_shapes=[pltpu.VMEM((block_b, e_pad), jnp.float32)],
        ),
        compiler_params=pltpu.CompilerParams(
            dimension_semantics=("parallel",)),
    )(idx_p, emb_p, w_p, b_p)

    return out_p[:B, :O]


if __name__ == "__main__":
    # Small shapes consistent with the module:
    #   num_embeddings=64, embedding_dim=32,
    #   dense_input_size=32, dense_output_size=32, dense_layers_count=3
    num_embeddings = 64
    embedding_dim = 32
    dense_input_size = 32
    dense_output_size = 32
    dense_layers_count = 3
    batch = 8
    bag = 4

    key = jax.random.PRNGKey(0)
    k_idx, k_emb, k_w, k_b = jax.random.split(key, 4)

    # Input: integer index bags, shape (batch, bag) — EmbeddingBag 2D-input form.
    indices = jax.random.randint(k_idx, (batch, bag), 0, num_embeddings, dtype=jnp.int32)

    # Deterministic parameter init (mirrors PyTorch defaults in spirit).
    emb_table = jax.random.normal(k_emb, (num_embeddings, embedding_dim), dtype=jnp.float32)
    bound = 1.0 / float(dense_input_size) ** 0.5
    weights = jax.random.uniform(
        k_w, (dense_layers_count, dense_output_size, dense_input_size),
        minval=-bound, maxval=bound, dtype=jnp.float32)
    biases = jax.random.uniform(
        k_b, (dense_layers_count, dense_output_size),
        minval=-bound, maxval=bound, dtype=jnp.float32)

    out = dummy_model_forward(indices, emb_table, weights, biases)
    out = jax.block_until_ready(out)

    # Pure-JAX reference of the same forward pass (unfolded layer stack).
    ref = emb_table[indices].mean(axis=1)
    for l in range(dense_layers_count):
        ref = ref @ weights[l].T + biases[l]
    ref = jax.nn.softmax(ref, axis=1)

    assert out.shape == (batch, dense_output_size)
    # approx=True reciprocal + folded-weight reassociation -> looser tolerance.
    assert jnp.allclose(out, ref, atol=2e-3, rtol=2e-3), \
        float(jnp.max(jnp.abs(out - ref)))

    print("KERNEL_OK")
</pallas_src>

<mosaic_0001>
module attributes {stable_mosaic.version = 11 : i64} {
  func.func @dummy_model_kernel(%arg0: i32, %arg1: memref<8x4xi32, #tpu.memory_space<smem>>, %arg2: memref<64x128xf32, #tpu.memory_space<vmem>>, %arg3: memref<128x128xf32, #tpu.memory_space<vmem>>, %arg4: memref<1x128xf32, #tpu.memory_space<vmem>>, %arg5: memref<8x128xf32, #tpu.memory_space<vmem>>, %arg6: memref<8x128xf32, #tpu.memory_space<vmem>>) attributes {dimension_semantics = [#tpu.dimension_semantics<parallel>], iteration_bounds = array<i64: 1>, scalar_prefetch = 1 : i64, scratch_operands = 1 : i64, tpu.core_type = #tpu.core_type<tc>, window_params = [{pipeline_mode = #tpu.pipeline_mode<synchronous>, transform_indices = @transform_0, window_bounds = array<i64: 64, 128>}, {pipeline_mode = #tpu.pipeline_mode<synchronous>, transform_indices = @transform_1, window_bounds = array<i64: 128, 128>}, {pipeline_mode = #tpu.pipeline_mode<synchronous>, transform_indices = @transform_2, window_bounds = array<i64: 1, 128>}, {transform_indices = @transform_3, window_bounds = array<i64: 8, 128>}]} {
    %c0_i32 = arith.constant 0 : i32
    %c8_i32 = arith.constant 8 : i32
    %0 = arith.addi %c0_i32, %c8_i32 : i32
    %c1_i32 = arith.constant 1 : i32
    scf.for %arg7 = %c0_i32 to %0 step %c1_i32  : i32 {
      %c1_i32_10 = arith.constant 1 : i32
      %18 = arith.muli %arg7, %c1_i32_10 : i32
      %c0_i32_11 = arith.constant 0 : i32
      %19 = arith.addi %c0_i32_11, %18 : i32
      %c8_i32_12 = arith.constant 8 : i32
      %20 = arith.muli %arg0, %c8_i32_12 : i32
      %21 = arith.addi %20, %19 : i32
      %22 = arith.index_cast %21 : i32 to index
      %c0_13 = arith.constant 0 : index
      %23 = memref.load %arg1[%22, %c0_13] : memref<8x4xi32, #tpu.memory_space<smem>>
      %24 = arith.index_cast %23 : i32 to index
      %c0_14 = arith.constant 0 : index
      %25 = vector.load %arg2[%24, %c0_14] : memref<64x128xf32, #tpu.memory_space<vmem>>, vector<1x128xf32>
      %26 = arith.index_cast %21 : i32 to index
      %c1 = arith.constant 1 : index
      %27 = memref.load %arg1[%26, %c1] : memref<8x4xi32, #tpu.memory_space<smem>>
      %28 = arith.index_cast %27 : i32 to index
      %c0_15 = arith.constant 0 : index
      %29 = vector.load %arg2[%28, %c0_15] : memref<64x128xf32, #tpu.memory_space<vmem>>, vector<1x128xf32>
      %30 = arith.addf %25, %29 : vector<1x128xf32>
      %31 = arith.index_cast %21 : i32 to index
      %c2 = arith.constant 2 : index
      %32 = memref.load %arg1[%31, %c2] : memref<8x4xi32, #tpu.memory_space<smem>>
      %33 = arith.index_cast %32 : i32 to index
      %c0_16 = arith.constant 0 : index
      %34 = vector.load %arg2[%33, %c0_16] : memref<64x128xf32, #tpu.memory_space<vmem>>, vector<1x128xf32>
      %35 = arith.addf %30, %34 : vector<1x128xf32>
      %36 = arith.index_cast %21 : i32 to index
      %c3 = arith.constant 3 : index
      %37 = memref.load %arg1[%36, %c3] : memref<8x4xi32, #tpu.memory_space<smem>>
      %38 = arith.index_cast %37 : i32 to index
      %c0_17 = arith.constant 0 : index
      %39 = vector.load %arg2[%38, %c0_17] : memref<64x128xf32, #tpu.memory_space<vmem>>, vector<1x128xf32>
      %40 = arith.addf %35, %39 : vector<1x128xf32>
      %cst_18 = arith.constant 2.500000e-01 : f32
      %41 = vector.broadcast %cst_18 : f32 to vector<1x128xf32>
      %42 = arith.mulf %40, %41 : vector<1x128xf32>
      %43 = arith.index_cast %19 : i32 to index
      %c0_19 = arith.constant 0 : index
      %44 = vector.load %arg6[%43, %c0_19] : memref<8x128xf32, #tpu.memory_space<vmem>>, vector<1x128xf32>
      tpu.vector_store %arg6[%43, %c0_19], %42 {strides = array<i32>} : memref<8x128xf32, #tpu.memory_space<vmem>>, vector<1x128xf32>,
    }
    %c8_i32_0 = arith.constant 8 : i32
    %c0 = arith.constant 0 : index
    %c0_1 = arith.constant 0 : index
    %1 = vector.load %arg6[%c0, %c0_1] : memref<8x128xf32, #tpu.memory_space<vmem>>, vector<8x128xf32>
    %c0_2 = arith.constant 0 : index
    %c0_3 = arith.constant 0 : index
    %2 = vector.load %arg3[%c0_2, %c0_3] : memref<128x128xf32, #tpu.memory_space<vmem>>, vector<128x128xf32>
    %cst = arith.constant dense<0.000000e+00> : vector<8x128xf32>
    %3 = tpu.matmul %1, %2, %cst {dimension_numbers = #tpu.dot_dimension_numbers<[1], [0], [0], [1], [0, 0, 1, 1], [], []>} : vector<8x128xf32>, vector<128x128xf32>, vector<8x128xf32> -> vector<8x128xf32>
    %c0_4 = arith.constant 0 : index
    %c0_5 = arith.constant 0 : index
    %4 = vector.load %arg4[%c0_4, %c0_5] : memref<1x128xf32, #tpu.memory_space<vmem>>, vector<1x128xf32>
    %5 = vector.broadcast %4 : vector<1x128xf32> to vector<8x128xf32>
    %6 = arith.addf %3, %5 : vector<8x128xf32>
    %cst_6 = arith.constant dense<0xFF800000> : vector<8xf32>
    %7 = vector.multi_reduction <maximumf>, %6, %cst_6 [1] : vector<8x128xf32> to vector<8xf32>
    %8 = vector.shape_cast %7 : vector<8xf32> to vector<8x1xf32>
    %9 = vector.broadcast %8 : vector<8x1xf32> to vector<8x128xf32>
    %10 = arith.subf %6, %9 : vector<8x128xf32>
    %11 = math.exp %10 : vector<8x128xf32>
    %cst_7 = arith.constant dense<0.000000e+00> : vector<8xf32>
    %12 = vector.multi_reduction <add>, %11, %cst_7 [1] : vector<8x128xf32> to vector<8xf32>
    %13 = vector.shape_cast %12 : vector<8xf32> to vector<8x1xf32>
    %14 = tpu.reciprocal %13 {approx = true} : vector<8x1xf32> -> vector<8x1xf32>
    %15 = vector.broadcast %14 : vector<8x1xf32> to vector<8x128xf32>
    %16 = arith.mulf %11, %15 : vector<8x128xf32>
    %c0_8 = arith.constant 0 : index
    %c0_9 = arith.constant 0 : index
    %17 = vector.load %arg5[%c0_8, %c0_9] : memref<8x128xf32, #tpu.memory_space<vmem>>, vector<8x128xf32>
    tpu.vector_store %arg5[%c0_8, %c0_9], %16 {strides = array<i32>} : memref<8x128xf32, #tpu.memory_space<vmem>>, vector<8x128xf32>,
    return
  }
  func.func @transform_0(%arg0: i32, %arg1: memref<8x4xi32, #tpu.memory_space<smem>>) -> (i32, i32) {
    %c0_i32 = arith.constant 0 : i32
    %c0_i32_0 = arith.constant 0 : i32
    %c0_i32_1 = arith.constant 0 : i32
    return %c0_i32, %c0_i32_0 : i32, i32
  }
  func.func @transform_1(%arg0: i32, %arg1: memref<8x4xi32, #tpu.memory_space<smem>>) -> (i32, i32) {
    %c0_i32 = arith.constant 0 : i32
    %c0_i32_0 = arith.constant 0 : i32
    %c0_i32_1 = arith.constant 0 : i32
    return %c0_i32, %c0_i32_0 : i32, i32
  }
  func.func @transform_2(%arg0: i32, %arg1: memref<8x4xi32, #tpu.memory_space<smem>>) -> (i32, i32) {
    %c0_i32 = arith.constant 0 : i32
    %c0_i32_0 = arith.constant 0 : i32
    %c0_i32_1 = arith.constant 0 : i32
    return %c0_i32, %c0_i32_0 : i32, i32
  }
  func.func @transform_3(%arg0: i32, %arg1: memref<8x4xi32, #tpu.memory_space<smem>>) -> (i32, i32) {
    %c0_i32 = arith.constant 0 : i32
    %c0_i32_0 = arith.constant 0 : i32
    return %arg0, %c0_i32 : i32, i32
  }
}

</mosaic_0001>

<llo_original>
// kernel: tpu_custom_call.1
$region0: #{tpu_custom_call.1}
  #allocation0 [shape = 'u32[]', space=smem, size = 0x4, offset = 0x4, fixed_abs, tag = 'smem constant byte address 0x4 - core index']
  #allocation1 [shape = 'u32[144,128]{1,0:T(1,128)}', space=vmem, size = 0x12000, scoped, tag = 'internal scratch']
  #allocation2 [shape = 'f32[8,128]{1,0:T(8,128)}', space=vmem, size = 0x1000, scoped, tag = 'scratch operand']
  #allocation3 [shape = 's32[1]{0}', space=sflag, size = 0x4, scoped, tag = 'scoped memory for tpu_custom_call.1']
  #allocation4 [shape = 'u8[4096]{0}', space=smem, size = 0x1000, scoped, tag = 'prefetched SMEM operand 0']
  %s0 = inlined_call_operand.vmem [shape: s32[8,4], index: 0, kind: input, shape index: {}]
  %s1 = inlined_call_operand.hbm [shape: f32[64,128], index: 1, kind: input, shape index: {}]
  %s2 = inlined_call_operand.hbm [shape: f32[128,128], index: 2, kind: input, shape index: {}]
  %s3 = inlined_call_operand.vmem [shape: f32[1,128], index: 3, kind: input, shape index: {}]
  %s4 = inlined_call_operand.hbm [shape: f32[8,128], index: 4, kind: output, shape index: {}]
  %s5 = sld [smem:[#allocation0]]
  $region37: #{tpu_custom_call.1} parent=0
    _
  %s7 = ssub.s32 1, %s5
  %s8 = scalar_select 0, %s7, %s5
  %s9 = sshll.u32 %s0, 4
  %s10 = int_to_ptr.vmem [resolvable:$true] %s9
  %12 = dma.vmem_to_smem %s10, 128, [#allocation4], [#allocation3]
  %13 = dma.done [#allocation3], 128
  %14 = sfence
  $region1: #{tpu_custom_call.1} parent=0
    #allocation5 [shape = 'u8[32768]{0}', space=vmem, size = 0x8000, scoped, tag = 'input window, operand 1, single buffered']
    #allocation6 [shape = 's32[1]{0}', space=sflag, size = 0x4, scoped, tag = 'scoped memory for tpu_custom_call.1']
    #allocation7 [shape = 's32[1]{0}', space=sflag, size = 0x4, scoped, tag = 'scoped memory for tpu_custom_call.1']
    #allocation8 [shape = 'u8[65536]{0}', space=vmem, size = 0x10000, scoped, tag = 'input window, operand 2, single buffered']
    #allocation9 [shape = 's32[1]{0}', space=sflag, size = 0x4, scoped, tag = 'scoped memory for tpu_custom_call.1']
    #allocation10 [shape = 'u8[4096]{0}', space=vmem, size = 0x1000, scoped, tag = 'output window, operand 0, single buffered']
    %15 = vsyncpa [#allocation6], 0
    %16 = vsyncpa [#allocation9], 0
    %17 = vsyncpa [#allocation7], 0
    // Predicated region
    $region2: #{tpu_custom_call.1} parent=1 // pred_check
      _
    $region3: #{tpu_custom_call.1} parent=1 // pred_check_branch
      %19 = sbr.rel (0) target = $region5
    $region4: #{tpu_custom_call.1} parent=1 // pred_region
      %s21 = ssub.s32 1024, 1024
      %22 = vsyncadd [#allocation6], %s21
      %s23 = sshll.u32 [#allocation5], 4
      %s24 = int_to_ptr.vmem [resolvable:$true] %s23
      %29 = dma.hbm_to_vmem [thread:$0]  %s1, 1024, %s24, [#allocation6], 128, 128, 8
    $region5: #{tpu_custom_call.1} parent=1 // pred_fallthru
      _
    // Predicated region
    $region6: #{tpu_custom_call.1} parent=1 // pred_check
      _
    $region7: #{tpu_custom_call.1} parent=1 // pred_check_branch
      %31 = sbr.rel (0) target = $region9
    $region8: #{tpu_custom_call.1} parent=1 // pred_region
      %s33 = ssub.s32 2048, 2048
      %34 = vsyncadd [#allocation9], %s33
      %s35 = sshll.u32 [#allocation8], 4
      %s36 = int_to_ptr.vmem [resolvable:$true] %s35
      %41 = dma.hbm_to_vmem [thread:$0]  %s2, 2048, %s36, [#allocation9], 128, 128, 8
    $region9: #{tpu_custom_call.1} parent=1 // pred_fallthru
      _
    // Predicated region
    $region10: #{tpu_custom_call.1} parent=1 // pred_check
      _
    $region11: #{tpu_custom_call.1} parent=1 // pred_check_branch
      %43 = sbr.rel (0) target = $region13
    $region12: #{tpu_custom_call.1} parent=1 // pred_region
      _
    $region13: #{tpu_custom_call.1} parent=1 // pred_fallthru
      _
    // Predicated region
    $region14: #{tpu_custom_call.1} parent=1 // pred_check
      _
    $region15: #{tpu_custom_call.1} parent=1 // pred_check_branch
      %45 = sbr.rel (0) target = $region17
    $region16: #{tpu_custom_call.1} parent=1 // pred_region
      %46 = dma.done [#allocation6], 1024
    $region17: #{tpu_custom_call.1} parent=1 // pred_fallthru
      _
    // Predicated region
    $region18: #{tpu_custom_call.1} parent=1 // pred_check
      _
    $region19: #{tpu_custom_call.1} parent=1 // pred_check_branch
      %48 = sbr.rel (0) target = $region21
    $region20: #{tpu_custom_call.1} parent=1 // pred_region
      %49 = dma.done [#allocation9], 2048
    $region21: #{tpu_custom_call.1} parent=1 // pred_fallthru
      _
    loop: start=0, step=1, limit=8
    $region22: #{tpu_custom_call.1} parent=1 // loop_pre_header
      _
    $region23: #{tpu_custom_call.1} parent=1 // loop_header
      %s51 = sphi 0, %s55
      %p52 = scmp.ge.s32.totalorder %s51, 8
    $region24: #{tpu_custom_call.1} parent=1 // loop_header_branch
      %54 = sbr.rel (%p52) target = $region28
    $region25: #{tpu_custom_call.1} parent=1 // loop_body
      %s56 = smul.u32 0, 8
      %s57 = sadd.s32 %s56, %s51
      %s58 = smul.u32 %s57, 128
      %s59 = sld [smem:[#allocation4 + %s58]]
      %s60 = scalar_lea.vmem [#allocation5], %s59
      %v61 = vld [vmem:[%s60] sm:$0x1]
      %s62 = sadd.s32 %s58, 1
      %s63 = sld [smem:[#allocation4 + %s62]]
      %s64 = scalar_lea.vmem [#allocation5], %s63
      %v65 = vld [vmem:[%s64] sm:$0x1]
      %v66 = vadd.f32 %v61, %v65
      %s67 = sadd.s32 %s58, 2
      %s68 = sld [smem:[#allocation4 + %s67]]
      %s69 = scalar_lea.vmem [#allocation5], %s68
      %v70 = vld [vmem:[%s69] sm:$0x1]
      %v71 = vadd.f32 %v66, %v70
      %s72 = sadd.s32 %s58, 3
      %s73 = sld [smem:[#allocation4 + %s72]]
      %s74 = scalar_lea.vmem [#allocation5], %s73
      %v75 = vld [vmem:[%s74] sm:$0x1]
      %v76 = vadd.f32 %v71, %v75
      %v77 = vmul.f32 %v76, 0.25
      %s78 = scalar_lea.vmem [#allocation2], %s51
      %79 = vst [vmem:[%s78] sm:$0x1] %v77
    $region26: #{tpu_custom_call.1} parent=1 // loop_footer
      %s55 = sadd.s32 1, %s51
    $region27: #{tpu_custom_call.1} parent=1 // loop_footer_branch
      %50 = sbr.rel target = $region23
    $region28: #{tpu_custom_call.1} parent=1 // loop_exit
      _
    %v80 = vld [vmem:[#allocation2] sm:$0xff]
    %v81 = vld [vmem:[#allocation8] sm:$0xff]
    %v82 = vld [vmem:[#allocation8 + $0x8] sm:$0xff]
    %v83 = vld [vmem:[#allocation8 + $0x10] sm:$0xff]
    %v84 = vld [vmem:[#allocation8 + $0x18] sm:$0xff]
    %v85 = vld [vmem:[#allocation8 + $0x20] sm:$0xff]
    %v86 = vld [vmem:[#allocation8 + $0x28] sm:$0xff]
    %v87 = vld [vmem:[#allocation8 + $0x30] sm:$0xff]
    %v88 = vld [vmem:[#allocation8 + $0x38] sm:$0xff]
    %v89 = vld [vmem:[#allocation8 + $0x40] sm:$0xff]
    %v90 = vld [vmem:[#allocation8 + $0x48] sm:$0xff]
    %v91 = vld [vmem:[#allocation8 + $0x50] sm:$0xff]
    %v92 = vld [vmem:[#allocation8 + $0x58] sm:$0xff]
    %v93 = vld [vmem:[#allocation8 + $0x60] sm:$0xff]
    %v94 = vld [vmem:[#allocation8 + $0x68] sm:$0xff]
    %v95 = vld [vmem:[#allocation8 + $0x70] sm:$0xff]
    %v96 = vld [vmem:[#allocation8 + $0x78] sm:$0xff]
    %v97 = vld [vmem:[%s3] sm:$0x1]
    %v99 = vlaneseq
    %v100 = vshrl.u32 %v99, 7
    %v101 = vsub.s32 0, %v100
    %v102 = vrot.slane %v97, %v101
    %104 = vmatprep.subr.mxu0 0.0
    %105 = vmatpush1.msra.mxu0 %v96
    %106 = vmatprep.subr.mxu0 0.0
    %107 = vmatpush1.msra.mxu0 %v95
    %108 = vmatprep.subr.mxu0 0.0
    %109 = vmatpush1.msra.mxu0 %v94
    %110 = vmatprep.subr.mxu0 0.0
    %111 = vmatpush1.msra.mxu0 %v93
    %112 = vmatprep.subr.mxu0 0.0
    %113 = vmatpush1.msra.mxu0 %v92
    %114 = vmatprep.subr.mxu0 0.0
    %115 = vmatpush1.msra.mxu0 %v91
    %116 = vmatprep.subr.mxu0 0.0
    %117 = vmatpush1.msra.mxu0 %v90
    %118 = vmatprep.subr.mxu0 0.0
    %119 = vmatpush1.msra.mxu0 %v89
    %120 = vmatprep.subr.mxu0 0.0
    %121 = vmatpush1.msra.mxu0 %v88
    %122 = vmatprep.subr.mxu0 0.0
    %123 = vmatpush1.msra.mxu0 %v87
    %124 = vmatprep.subr.mxu0 0.0
    %125 = vmatpush1.msra.mxu0 %v86
    %126 = vmatprep.subr.mxu0 0.0
    %127 = vmatpush1.msra.mxu0 %v85
    %128 = vmatprep.subr.mxu0 0.0
    %129 = vmatpush1.msra.mxu0 %v84
    %130 = vmatprep.subr.mxu0 0.0
    %131 = vmatpush1.msra.mxu0 %v83
    %132 = vmatprep.subr.mxu0 0.0
    %133 = vmatpush1.msra.mxu0 %v82
    %134 = vmatprep.subr.mxu0 0.0
    %135 = vmatpush1.msra.mxu0 %v81
    %136 = vmatprep.subr.mxu0 0.0
    %137 = vmatpush2.msra.mxu0 0.0
    %138 = vmatprep.subr.mxu0 0.0
    %139 = vmatpush2.msra.mxu0 0.0
    %140 = vmatprep.subr.mxu0 0.0
    %141 = vmatpush2.msra.mxu0 0.0
    %142 = vmatprep.subr.mxu0 0.0
    %143 = vmatpush2.msra.mxu0 0.0
    %144 = vmatprep.subr.mxu0 0.0
    %145 = vmatpush2.msra.mxu0 0.0
    %146 = vmatprep.subr.mxu0 0.0
    %147 = vmatpush2.msra.mxu0 0.0
    %148 = vmatprep.subr.mxu0 0.0
    %149 = vmatpush2.msra.mxu0 0.0
    %150 = vmatprep.subr.mxu0 0.0
    %151 = vmatpush2.msra.mxu0 0.0
    %152 = vmatprep.subr.mxu0 0.0
    %153 = vmatpush2.msra.mxu0 0.0
    %154 = vmatprep.subr.mxu0 0.0
    %155 = vmatpush2.msra.mxu0 0.0
    %156 = vmatprep.subr.mxu0 0.0
    %157 = vmatpush2.msra.mxu0 0.0
    %158 = vmatprep.subr.mxu0 0.0
    %159 = vmatpush2.msra.mxu0 0.0
    %160 = vmatprep.subr.mxu0 0.0
    %161 = vmatpush2.msra.mxu0 0.0
    %162 = vmatprep.subr.mxu0 0.0
    %163 = vmatpush2.msra.mxu0 0.0
    %164 = vmatprep.subr.mxu0 0.0
    %165 = vmatpush2.msra.mxu0 0.0
    %166 = vmatprep.subr.mxu0 0.0
    %167 = vmatpush2.msra.mxu0 0.0
    %168 = vmatprep.mubr.f32.mxu0 0.0
    %169 = vmatmul.mubr.f32.gmra.mxu0 %v80
    %v170 = vpop.f32.mrf.mxu0
    %v171 = vadd.f32 %v102, %v170
    %v172 = vpop.f32.mrf.mxu0
    %173 = vdwg.mxu0
    %174 = vmax.xlane.f32.xlu0 %v171
    %v175 = vpop.xlane.xlu0 %174
    %v176 = vsub.f32 %v171, %v175
    %v177 = vmul.f32 %v176, 1.442695
    %v178 = vpow.pop %v177
    %179 = vadd.xlane.f32.xlu0 %v178
    %v180 = vpop.xlane.xlu0 %179
    %v181 = vrcp.pop %v180
    %v182 = vmul.f32 %v178, %v181
    %183 = vst [vmem:[#allocation10] sm:$0xff] %v182
    // Predicated region
    $region29: #{tpu_custom_call.1} parent=1 // pred_check
      _
    $region30: #{tpu_custom_call.1} parent=1 // pred_check_branch
      %185 = sbr.rel (0) target = $region32
    $region31: #{tpu_custom_call.1} parent=1 // pred_region
      %s187 = ssub.s32 128, 128
      %188 = vsyncadd [#allocation7], %s187
      %s190 = sshll.u32 [#allocation10], 4
      %s191 = int_to_ptr.vmem [resolvable:$true] %s190
      %193 = dma.vmem_to_hbm [thread:$0]  %s191, 128, %s4, [#allocation7]
    $region32: #{tpu_custom_call.1} parent=1 // pred_fallthru
      _
    // Predicated region
    $region33: #{tpu_custom_call.1} parent=1 // pred_check
      _
    $region34: #{tpu_custom_call.1} parent=1 // pred_check_branch
      %195 = sbr.rel (0) target = $region36
    $region35: #{tpu_custom_call.1} parent=1 // pred_region
      %196 = dma.done [#allocation7], 128
    $region36: #{tpu_custom_call.1} parent=1 // pred_fallthru
      _
    %197 = vsyncpa [#allocation6], 1
    %198 = vsyncpa [#allocation9], 1
    %199 = vsyncpa [#allocation7], 1

</llo_original>
